<compile_context>
chip_gen: v7x
topology: tpu7x:2x2x1
jax: 0.10.0
libtpu: 0.0.40
codegen_flags: <defaults>
</compile_context>

<pallas_src>
import jax
import jax.numpy as jnp
from jax.experimental import pallas as pl
from jax.experimental.pallas import tpu as pltpu

HIDDEN_LAYERS = [128, 64]


def _round_up(n, m):
    return ((n + m - 1) // m) * m


def _choose_tile(n, tile_m):
    """Pick the batch (lane) tile.

    - tiny batches: one block spanning the full array (no (8,128) constraint issue,
      since block dims equal the full array dims).
    - otherwise: a multiple of 128, as large as tile_m, but split so the grid has at
      least 2 steps (v7x has 2 TensorCores; a 1-step grid leaves one idle)."""
    if n <= 256:
        return n, 1
    tile_m = max(128, (tile_m // 128) * 128)
    tm = min(tile_m, _round_up(pl.cdiv(n, 2), 128))
    return tm, pl.cdiv(n, tm)


def mlp_kernel(x_ref, w1_ref, b1_ref, w2_ref, b2_ref, w3_ref, b3_ref, o_ref):
    # x_ref:  (input_dim, tm) bf16        w1_ref: (h1, input_dim) bf16
    # b1_ref: (h1, 1) f32                 w2_ref: (h2, h1) bf16
    # b2_ref: (h2, 1) f32                 w3_ref: (h2, 1) f32  (or (out, h2) bf16)
    # b3_ref: (out, 1) f32                o_ref:  (out, tm) f32

    # ----- Layer 1: Linear + ReLU (MXU bf16 inputs, f32 accumulation) -----
    h1 = jnp.dot(w1_ref[...], x_ref[...], preferred_element_type=jnp.float32)
    h1 = jnp.maximum(h1 + b1_ref[...], 0.0)              # (h1, tm) f32; bias/ReLU f32 (v5e-safe)

    # ----- Layer 2: Linear + ReLU -----
    h2 = jnp.dot(w2_ref[...], h1.astype(jnp.bfloat16),
                 preferred_element_type=jnp.float32)
    h2 = jnp.maximum(h2 + b2_ref[...], 0.0)               # (h2, tm) f32, lane-dense

    # ----- Output layer (no activation) -----
    out_dim = o_ref.shape[0]
    if out_dim == 1:
        # (h2, tm) * (h2, 1) -> sublane reduce -> (1, tm).  VPU + XLU; the MXU would be
        # <1% utilized for a single output feature, and the store stays lane-dense.
        out = jnp.sum(h2 * w3_ref[...], axis=0, keepdims=True) + b3_ref[...]
    else:
        out = jnp.dot(w3_ref[...], h2.astype(jnp.bfloat16),
                      preferred_element_type=jnp.float32) + b3_ref[...]
    o_ref[...] = out.astype(o_ref.dtype)


def mlp_forward(x, params, *, tile_m=2048):
    """x: (N, input_dim) f32; params stored PyTorch-style as W:(in,out), b:(1,out)."""
    n, input_dim = x.shape
    h1d = params["w1"].shape[1]
    h2d = params["w2"].shape[1]
    out_dim = params["w3"].shape[1]

    # ---- one-time layout plumbing / casts in XLA (outside the kernel) ----
    xt = x.T.astype(jnp.bfloat16)                         # (input_dim, N) bf16
    w1t = params["w1"].T.astype(jnp.bfloat16)             # (h1, input_dim) bf16
    w2t = params["w2"].T.astype(jnp.bfloat16)             # (h2, h1) bf16
    b1 = params["b1"].reshape(h1d, 1).astype(jnp.float32)
    b2 = params["b2"].reshape(h2d, 1).astype(jnp.float32)
    b3 = params["b3"].reshape(out_dim, 1).astype(jnp.float32)
    if out_dim == 1:
        # pre-shaped f32 column for the in-kernel VPU multiply + sublane reduce
        w3 = params["w3"].reshape(h2d, 1).astype(jnp.float32)
    else:
        w3 = params["w3"].T.astype(jnp.bfloat16)           # (out, h2) bf16 for MXU

    tm, steps = _choose_tile(n, tile_m)

    # Weights/biases (~20 KB bf16 total): constant block index => fetched once,
    # VMEM-resident across all grid steps.
    resident = lambda a: pl.BlockSpec(a.shape, lambda i: (0,) * a.ndim)

    out_t = pl.pallas_call(
        mlp_kernel,
        out_shape=jax.ShapeDtypeStruct((out_dim, n), jnp.float32),
        grid=(steps,),
        in_specs=[
            pl.BlockSpec((input_dim, tm), lambda i: (0, i)),  # x: streamed by batch tile
            resident(w1t), resident(b1),
            resident(w2t), resident(b2),
            resident(w3), resident(b3),
        ],
        out_specs=pl.BlockSpec((out_dim, tm), lambda i: (0, i)),
        compiler_params=pltpu.CompilerParams(
            # Batch tiles are independent; on v7x switch to pltpu.CORE_PARALLEL if a
            # trace shows the second TensorCore idle.  VMEM at tm=2048 is < 4 MiB,
            # far below every generation's scoped limit, so no vmem_limit_bytes needed.
            dimension_semantics=("parallel",),
        ),
    )(xt, w1t, b1, w2t, b2, w3, b3)

    return out_t.T  # (N, out_dim) f32 — matches nn.Linear output layout


def init_params(key, input_dim, output_dim, hidden_layers):
    """Deterministic init mimicking nn.Linear default (uniform +/- 1/sqrt(fan_in))."""
    dims = [input_dim] + list(hidden_layers) + [output_dim]
    params = {}
    for i in range(len(dims) - 1):
        fan_in, fan_out = dims[i], dims[i + 1]
        key, kw, kb = jax.random.split(key, 3)
        bound = 1.0 / jnp.sqrt(float(fan_in))
        params[f"w{i + 1}"] = jax.random.uniform(
            kw, (fan_in, fan_out), jnp.float32, -bound, bound)
        params[f"b{i + 1}"] = jax.random.uniform(
            kb, (1, fan_out), jnp.float32, -bound, bound)
    return params


def mlp_reference(x, params):
    h1 = jnp.maximum(x @ params["w1"] + params["b1"], 0.0)
    h2 = jnp.maximum(h1 @ params["w2"] + params["b2"], 0.0)
    return h2 @ params["w3"] + params["b3"]


if __name__ == "__main__":
    key = jax.random.PRNGKey(0)
    batch, input_dim, output_dim = 1024, 16, 1

    k_params, k_x = jax.random.split(key)
    params = init_params(k_params, input_dim, output_dim, HIDDEN_LAYERS)
    # X was StandardScaler-normalized in the original script; standard normal is a stand-in.
    x = jax.random.normal(k_x, (batch, input_dim), dtype=jnp.float32)

    out = jax.block_until_ready(mlp_forward(x, params))   # tm=512 -> 2 grid steps
    ref = mlp_reference(x, params)
    assert out.shape == (batch, output_dim)
    # bf16 MXU inputs (f32 accumulation) drift slightly from the f32 reference.
    assert jnp.allclose(out, ref, atol=1e-2, rtol=1e-2), float(jnp.max(jnp.abs(out - ref)))

    # Ragged batch (N not a multiple of the tile) exercises masked last-block writeback.
    x2 = jax.random.normal(jax.random.PRNGKey(1), (1000, input_dim), dtype=jnp.float32)
    out2 = jax.block_until_ready(mlp_forward(x2, params))
    ref2 = mlp_reference(x2, params)
    assert out2.shape == (1000, output_dim)
    assert jnp.allclose(out2, ref2, atol=1e-2, rtol=1e-2), float(jnp.max(jnp.abs(out2 - ref2)))

    print("KERNEL_OK")
</pallas_src>

<mosaic_0001>
module attributes {stable_mosaic.version = 11 : i64} {
  func.func @mlp_kernel(%arg0: i32, %arg1: memref<16x512xbf16, #tpu.memory_space<vmem>>, %arg2: memref<128x16xbf16, #tpu.memory_space<vmem>>, %arg3: memref<128x1xf32, #tpu.memory_space<vmem>>, %arg4: memref<64x128xbf16, #tpu.memory_space<vmem>>, %arg5: memref<64x1xf32, #tpu.memory_space<vmem>>, %arg6: memref<64x1xf32, #tpu.memory_space<vmem>>, %arg7: memref<1x1xf32, #tpu.memory_space<vmem>>, %arg8: memref<1x512xf32, #tpu.memory_space<vmem>>) attributes {dimension_semantics = [#tpu.dimension_semantics<parallel>], iteration_bounds = array<i64: 2>, scalar_prefetch = 0 : i64, scratch_operands = 0 : i64, tpu.core_type = #tpu.core_type<tc>, window_params = [{transform_indices = @transform_0, window_bounds = array<i64: 16, 512>}, {pipeline_mode = #tpu.pipeline_mode<synchronous>, transform_indices = @transform_1, window_bounds = array<i64: 128, 16>}, {pipeline_mode = #tpu.pipeline_mode<synchronous>, transform_indices = @transform_2, window_bounds = array<i64: 128, 1>}, {pipeline_mode = #tpu.pipeline_mode<synchronous>, transform_indices = @transform_3, window_bounds = array<i64: 64, 128>}, {pipeline_mode = #tpu.pipeline_mode<synchronous>, transform_indices = @transform_4, window_bounds = array<i64: 64, 1>}, {pipeline_mode = #tpu.pipeline_mode<synchronous>, transform_indices = @transform_5, window_bounds = array<i64: 64, 1>}, {pipeline_mode = #tpu.pipeline_mode<synchronous>, transform_indices = @transform_6, window_bounds = array<i64: 1, 1>}, {transform_indices = @transform_7, window_bounds = array<i64: 1, 512>}]} {
    %c0 = arith.constant 0 : index
    %c0_0 = arith.constant 0 : index
    %0 = vector.load %arg2[%c0, %c0_0] : memref<128x16xbf16, #tpu.memory_space<vmem>>, vector<128x16xbf16>
    %c0_1 = arith.constant 0 : index
    %c0_2 = arith.constant 0 : index
    %1 = vector.load %arg1[%c0_1, %c0_2] : memref<16x512xbf16, #tpu.memory_space<vmem>>, vector<16x512xbf16>
    %cst = arith.constant dense<0.000000e+00> : vector<128x512xf32>
    %2 = tpu.matmul %0, %1, %cst {dimension_numbers = #tpu.dot_dimension_numbers<[1], [0], [0], [1], [0, 0, 1, 1], [], []>} : vector<128x16xbf16>, vector<16x512xbf16>, vector<128x512xf32> -> vector<128x512xf32>
    %c0_3 = arith.constant 0 : index
    %c0_4 = arith.constant 0 : index
    %3 = vector.load %arg3[%c0_3, %c0_4] : memref<128x1xf32, #tpu.memory_space<vmem>>, vector<128x1xf32>
    %4 = vector.broadcast %3 : vector<128x1xf32> to vector<128x512xf32>
    %5 = arith.addf %2, %4 : vector<128x512xf32>
    %cst_5 = arith.constant 0.000000e+00 : f32
    %6 = vector.broadcast %cst_5 : f32 to vector<128x512xf32>
    %7 = arith.maximumf %5, %6 : vector<128x512xf32>
    %c0_6 = arith.constant 0 : index
    %c0_7 = arith.constant 0 : index
    %8 = vector.load %arg4[%c0_6, %c0_7] : memref<64x128xbf16, #tpu.memory_space<vmem>>, vector<64x128xbf16>
    %9 = arith.truncf %7 : vector<128x512xf32> to vector<128x512xbf16>
    %cst_8 = arith.constant dense<0.000000e+00> : vector<64x512xf32>
    %10 = tpu.matmul %8, %9, %cst_8 {dimension_numbers = #tpu.dot_dimension_numbers<[1], [0], [0], [1], [0, 0, 1, 1], [], []>} : vector<64x128xbf16>, vector<128x512xbf16>, vector<64x512xf32> -> vector<64x512xf32>
    %c0_9 = arith.constant 0 : index
    %c0_10 = arith.constant 0 : index
    %11 = vector.load %arg5[%c0_9, %c0_10] : memref<64x1xf32, #tpu.memory_space<vmem>>, vector<64x1xf32>
    %12 = vector.broadcast %11 : vector<64x1xf32> to vector<64x512xf32>
    %13 = arith.addf %10, %12 : vector<64x512xf32>
    %cst_11 = arith.constant 0.000000e+00 : f32
    %14 = vector.broadcast %cst_11 : f32 to vector<64x512xf32>
    %15 = arith.maximumf %13, %14 : vector<64x512xf32>
    %c0_12 = arith.constant 0 : index
    %c0_13 = arith.constant 0 : index
    %16 = vector.load %arg6[%c0_12, %c0_13] : memref<64x1xf32, #tpu.memory_space<vmem>>, vector<64x1xf32>
    %17 = vector.broadcast %16 : vector<64x1xf32> to vector<64x512xf32>
    %18 = arith.mulf %15, %17 : vector<64x512xf32>
    %cst_14 = arith.constant dense<0.000000e+00> : vector<512xf32>
    %19 = vector.multi_reduction <add>, %18, %cst_14 [0] : vector<64x512xf32> to vector<512xf32>
    %20 = vector.shape_cast %19 : vector<512xf32> to vector<1x512xf32>
    %c0_15 = arith.constant 0 : index
    %c0_16 = arith.constant 0 : index
    %21 = vector.load %arg7[%c0_15, %c0_16] : memref<1x1xf32, #tpu.memory_space<vmem>>, vector<1x1xf32>
    %22 = vector.broadcast %21 : vector<1x1xf32> to vector<1x512xf32>
    %23 = arith.addf %20, %22 : vector<1x512xf32>
    %c0_17 = arith.constant 0 : index
    %c0_18 = arith.constant 0 : index
    %24 = vector.load %arg8[%c0_17, %c0_18] : memref<1x512xf32, #tpu.memory_space<vmem>>, vector<1x512xf32>
    tpu.vector_store %arg8[%c0_17, %c0_18], %23 {strides = array<i32>} : memref<1x512xf32, #tpu.memory_space<vmem>>, vector<1x512xf32>,
    return
  }
  func.func @transform_0(%arg0: i32) -> (i32, i32) {
    %c0_i32 = arith.constant 0 : i32
    %c0_i32_0 = arith.constant 0 : i32
    return %c0_i32, %arg0 : i32, i32
  }
  func.func @transform_1(%arg0: i32) -> (i32, i32) {
    %c0_i32 = arith.constant 0 : i32
    %c0_i32_0 = arith.constant 0 : i32
    %c0_i32_1 = arith.constant 0 : i32
    return %c0_i32, %c0_i32_0 : i32, i32
  }
  func.func @transform_2(%arg0: i32) -> (i32, i32) {
    %c0_i32 = arith.constant 0 : i32
    %c0_i32_0 = arith.constant 0 : i32
    %c0_i32_1 = arith.constant 0 : i32
    return %c0_i32, %c0_i32_0 : i32, i32
  }
  func.func @transform_3(%arg0: i32) -> (i32, i32) {
    %c0_i32 = arith.constant 0 : i32
    %c0_i32_0 = arith.constant 0 : i32
    %c0_i32_1 = arith.constant 0 : i32
    return %c0_i32, %c0_i32_0 : i32, i32
  }
  func.func @transform_4(%arg0: i32) -> (i32, i32) {
    %c0_i32 = arith.constant 0 : i32
    %c0_i32_0 = arith.constant 0 : i32
    %c0_i32_1 = arith.constant 0 : i32
    return %c0_i32, %c0_i32_0 : i32, i32
  }
  func.func @transform_5(%arg0: i32) -> (i32, i32) {
    %c0_i32 = arith.constant 0 : i32
    %c0_i32_0 = arith.constant 0 : i32
    %c0_i32_1 = arith.constant 0 : i32
    return %c0_i32, %c0_i32_0 : i32, i32
  }
  func.func @transform_6(%arg0: i32) -> (i32, i32) {
    %c0_i32 = arith.constant 0 : i32
    %c0_i32_0 = arith.constant 0 : i32
    %c0_i32_1 = arith.constant 0 : i32
    return %c0_i32, %c0_i32_0 : i32, i32
  }
  func.func @transform_7(%arg0: i32) -> (i32, i32) {
    %c0_i32 = arith.constant 0 : i32
    %c0_i32_0 = arith.constant 0 : i32
    return %c0_i32, %arg0 : i32, i32
  }
}

</mosaic_0001>

<llo_original>
// kernel: tpu_custom_call.1
$region0: #{tpu_custom_call.1}
  #allocation0 [shape = 'u32[]', space=smem, size = 0x4, offset = 0x4, fixed_abs, tag = 'smem constant byte address 0x4 - core index']
  #allocation1 [shape = 'u32[144,128]{1,0:T(1,128)}', space=vmem, size = 0x12000, scoped, tag = 'internal scratch']
  #allocation2 [shape = 'f32[1,1]{1,0:T(1,128)S(1)}', space=vmem, size = 0x200, scoped, tag = 'scoped memory for tpu_custom_call.1']
  %s0 = inlined_call_operand.vmem [shape: bf16[16,1024], index: 0, kind: input, shape index: {}]
  %s1 = inlined_call_operand.vmem [shape: bf16[128,16], index: 1, kind: input, shape index: {}]
  %s2 = inlined_call_operand.vmem [shape: f32[128,1], index: 2, kind: input, shape index: {}]
  %s3 = inlined_call_operand.vmem [shape: bf16[64,128], index: 3, kind: input, shape index: {}]
  %s4 = inlined_call_operand.vmem [shape: f32[64,1], index: 4, kind: input, shape index: {}]
  %s5 = inlined_call_operand.vmem [shape: f32[64,1], index: 5, kind: input, shape index: {}]
  %s6 = inlined_call_operand.<no memory space> [shape: f32[1,1], index: 6, kind: input, shape index: {}]
  %s7 = inlined_call_operand.hbm [shape: f32[1,1024], index: 7, kind: output, shape index: {}]
  %s8 = sld [smem:[#allocation0]]
  $region84: #{tpu_custom_call.1} parent=0
    _
  %s10 = ssub.s32 1, %s8
  %s11 = scalar_select 0, %s10, %s8
  %v12 = vstv %s6
  %13 = vst [vmem:[#allocation2] sm:$0x1] %v12
  $region1: #{tpu_custom_call.1} parent=0
    #allocation3 [shape = 'u8[32768]{0}', space=vmem, size = 0x8000, scoped, tag = 'input window, operand 0']
    #allocation4 [shape = 'u8[4096]{0}', space=vmem, size = 0x1000, scoped, tag = 'output window, operand 0']
    #allocation5 [shape = 's32[2]{0}', space=sflag, size = 0x8, scoped, tag = 'scoped memory for tpu_custom_call.1']
    %14 = vsyncpa [#allocation5], 0
    %s15 = scalar_lea.sflag [#allocation5], 1
    %16 = vsyncpa %s15, 0
    loop: start=0, step=1, limit=4
    $region2: #{tpu_custom_call.1} parent=1 // loop_pre_header
      _
    $region3: #{tpu_custom_call.1} parent=1 // loop_header
      %s18 = sphi 0, %s22
      %p19 = scmp.ge.s32.totalorder %s18, 4
      %s28 = sphi 0, %s30
      %s31 = sphi 0, %s28
      %s32 = sphi 0, %s31
      %s48 = sphi 0, %s32
      %s52 = sphi 0, %s52
      %s54 = sphi 0, %s52
      %s55 = sphi 0, %s54
      %s69 = sphi 0, %s55
      %s73 = sphi 0, %s73
      %s75 = sphi 0, %s73
      %s76 = sphi 0, %s75
      %s90 = sphi 0, %s76
      %s94 = sphi 0, %s94
      %s96 = sphi 0, %s94
      %s97 = sphi 0, %s96
      %s111 = sphi 0, %s97
      %s115 = sphi 0, %s115
      %s117 = sphi 0, %s115
      %s118 = sphi 0, %s117
      %s132 = sphi 0, %s118
      %s136 = sphi 0, %s136
      %s138 = sphi 0, %s136
      %s139 = sphi 0, %s138
      %s153 = sphi 0, %s139
      %s157 = sphi 0, %s157
      %s159 = sphi 0, %s157
      %s160 = sphi 0, %s159
      %s174 = sphi 0, %s160
      %s180 = sphi 0, %s182
      %s183 = sphi 0, %s180
      %s184 = sphi 0, %s183
      %s200 = sphi 0, %s184
    $region4: #{tpu_custom_call.1} parent=1 // loop_header_branch
      %21 = sbr.rel (%p19) target = $region8
    $region5: #{tpu_custom_call.1} parent=1 // loop_body
      %s23 = ssub.s32 %s18, 1
      %s24 = ssub.s32 %s18, 2
      %s25 = sadd.s32 %s18, 1
      %s26 = ssub.s32 %s18, %s25
      %p27 = scmp.eq.s32.totalorder %s26, 0
      %s29 = sadd.s32 %s28, 1
      %s30 = scalar_select %p27, %s28, %s29
      %p33 = pneg %p27
      %p34 = scmp.eq.s32.totalorder %s18, 1
      %p35 = por %p33, %p34
      %p36 = scmp.ne.s32.totalorder %s28, %s31
      %p37 = scmp.eq.s32.totalorder %s18, 0
      %p38 = por %p36, %p37
      %p39 = scmp.ne.s32.totalorder %s28, %s31
      %p40 = scmp.eq.s32.totalorder %s23, 1
      %p41 = por %p39, %p40
      %p42 = scmp.ne.s32.totalorder %s31, %s32
      %p43 = scmp.eq.s32.totalorder %s23, 0
      %p44 = por %p42, %p43
      %p45 = scmp.ne.s32.totalorder %s31, %s32
      %p46 = scmp.eq.s32.totalorder %s24, 1
      %p47 = por %p45, %p46
      %p49 = scmp.ne.s32.totalorder %s32, %s48
      %p50 = scmp.eq.s32.totalorder %s24, 0
      %p51 = por %p49, %p50
      %s53 = sadd.s32 %s52, 1
      %p56 = scmp.eq.s32.totalorder %s18, 1
      %p57 = scmp.ne.s32.totalorder %s52, %s54
      %p58 = scmp.eq.s32.totalorder %s18, 0
      %p59 = por %p57, %p58
      %p60 = scmp.ne.s32.totalorder %s52, %s54
      %p61 = scmp.eq.s32.totalorder %s23, 1
      %p62 = por %p60, %p61
      %p63 = scmp.ne.s32.totalorder %s54, %s55
      %p64 = scmp.eq.s32.totalorder %s23, 0
      %p65 = por %p63, %p64
      %p66 = scmp.ne.s32.totalorder %s54, %s55
      %p67 = scmp.eq.s32.totalorder %s24, 1
      %p68 = por %p66, %p67
      %p70 = scmp.ne.s32.totalorder %s55, %s69
      %p71 = scmp.eq.s32.totalorder %s24, 0
      %p72 = por %p70, %p71
      %s74 = sadd.s32 %s73, 1
      %p77 = scmp.eq.s32.totalorder %s18, 1
      %p78 = scmp.ne.s32.totalorder %s73, %s75
      %p79 = scmp.eq.s32.totalorder %s18, 0
      %p80 = por %p78, %p79
      %p81 = scmp.ne.s32.totalorder %s73, %s75
      %p82 = scmp.eq.s32.totalorder %s23, 1
      %p83 = por %p81, %p82
      %p84 = scmp.ne.s32.totalorder %s75, %s76
      %p85 = scmp.eq.s32.totalorder %s23, 0
      %p86 = por %p84, %p85
      %p87 = scmp.ne.s32.totalorder %s75, %s76
      %p88 = scmp.eq.s32.totalorder %s24, 1
      %p89 = por %p87, %p88
      %p91 = scmp.ne.s32.totalorder %s76, %s90
      %p92 = scmp.eq.s32.totalorder %s24, 0
      %p93 = por %p91, %p92
      %s95 = sadd.s32 %s94, 1
      %p98 = scmp.eq.s32.totalorder %s18, 1
      %p99 = scmp.ne.s32.totalorder %s94, %s96
      %p100 = scmp.eq.s32.totalorder %s18, 0
      %p101 = por %p99, %p100
      %p102 = scmp.ne.s32.totalorder %s94, %s96
      %p103 = scmp.eq.s32.totalorder %s23, 1
      %p104 = por %p102, %p103
      %p105 = scmp.ne.s32.totalorder %s96, %s97
      %p106 = scmp.eq.s32.totalorder %s23, 0
      %p107 = por %p105, %p106
      %p108 = scmp.ne.s32.totalorder %s96, %s97
      %p109 = scmp.eq.s32.totalorder %s24, 1
      %p110 = por %p108, %p109
      %p112 = scmp.ne.s32.totalorder %s97, %s111
      %p113 = scmp.eq.s32.totalorder %s24, 0
      %p114 = por %p112, %p113
      %s116 = sadd.s32 %s115, 1
      %p119 = scmp.eq.s32.totalorder %s18, 1
      %p120 = scmp.ne.s32.totalorder %s115, %s117
      %p121 = scmp.eq.s32.totalorder %s18, 0
      %p122 = por %p120, %p121
      %p123 = scmp.ne.s32.totalorder %s115, %s117
      %p124 = scmp.eq.s32.totalorder %s23, 1
      %p125 = por %p123, %p124
      %p126 = scmp.ne.s32.totalorder %s117, %s118
      %p127 = scmp.eq.s32.totalorder %s23, 0
      %p128 = por %p126, %p127
      %p129 = scmp.ne.s32.totalorder %s117, %s118
      %p130 = scmp.eq.s32.totalorder %s24, 1
      %p131 = por %p129, %p130
      %p133 = scmp.ne.s32.totalorder %s118, %s132
      %p134 = scmp.eq.s32.totalorder %s24, 0
      %p135 = por %p133, %p134
      %s137 = sadd.s32 %s136, 1
      %p140 = scmp.eq.s32.totalorder %s18, 1
      %p141 = scmp.ne.s32.totalorder %s136, %s138
      %p142 = scmp.eq.s32.totalorder %s18, 0
      %p143 = por %p141, %p142
      %p144 = scmp.ne.s32.totalorder %s136, %s138
      %p145 = scmp.eq.s32.totalorder %s23, 1
      %p146 = por %p144, %p145
      %p147 = scmp.ne.s32.totalorder %s138, %s139
      %p148 = scmp.eq.s32.totalorder %s23, 0
      %p149 = por %p147, %p148
      %p150 = scmp.ne.s32.totalorder %s138, %s139
      %p151 = scmp.eq.s32.totalorder %s24, 1
      %p152 = por %p150, %p151
      %p154 = scmp.ne.s32.totalorder %s139, %s153
      %p155 = scmp.eq.s32.totalorder %s24, 0
      %p156 = por %p154, %p155
      %s158 = sadd.s32 %s157, 1
      %p161 = scmp.eq.s32.totalorder %s18, 1
      %p162 = scmp.ne.s32.totalorder %s157, %s159
      %p163 = scmp.eq.s32.totalorder %s18, 0
      %p164 = por %p162, %p163
      %p165 = scmp.ne.s32.totalorder %s157, %s159
      %p166 = scmp.eq.s32.totalorder %s23, 1
      %p167 = por %p165, %p166
      %p168 = scmp.ne.s32.totalorder %s159, %s160
      %p169 = scmp.eq.s32.totalorder %s23, 0
      %p170 = por %p168, %p169
      %p171 = scmp.ne.s32.totalorder %s159, %s160
      %p172 = scmp.eq.s32.totalorder %s24, 1
      %p173 = por %p171, %p172
      %p175 = scmp.ne.s32.totalorder %s160, %s174
      %p176 = scmp.eq.s32.totalorder %s24, 0
      %p177 = por %p175, %p176
      %s178 = ssub.s32 %s18, %s25
      %p179 = scmp.eq.s32.totalorder %s178, 0
      %s181 = sadd.s32 %s180, 1
      %s182 = scalar_select %p179, %s180, %s181
      %p185 = pneg %p179
      %p186 = scmp.eq.s32.totalorder %s18, 1
      %p187 = por %p185, %p186
      %p188 = scmp.ne.s32.totalorder %s180, %s183
      %p189 = scmp.eq.s32.totalorder %s18, 0
      %p190 = por %p188, %p189
      %p191 = scmp.ne.s32.totalorder %s180, %s183
      %p192 = scmp.eq.s32.totalorder %s23, 1
      %p193 = por %p191, %p192
      %p194 = scmp.ne.s32.totalorder %s183, %s184
      %p195 = scmp.eq.s32.totalorder %s23, 0
      %p196 = por %p194, %p195
      %p197 = scmp.ne.s32.totalorder %s183, %s184
      %p198 = scmp.eq.s32.totalorder %s24, 1
      %p199 = por %p197, %p198
      %p201 = scmp.ne.s32.totalorder %s184, %s200
      %p202 = scmp.eq.s32.totalorder %s24, 0
      %p203 = por %p201, %p202
      %p204 = scmp.le.s32.totalorder 1, %s18
      %p205 = scmp.lt.s32.totalorder %s18, 3
      %p206 = pnand %p204, %p205
      %p207 = pneg %p206
      // Predicated region
      $region9: #{tpu_custom_call.1} parent=5 // pred_check
        _
      $region10: #{tpu_custom_call.1} parent=5 // pred_check_branch
        %209 = sbr.rel (%p206) target = $region12
      $region11: #{tpu_custom_call.1} parent=5 // pred_region
        %s210 = ssub.s32 %s18, 1
        // Predicated region
        $region13: #{tpu_custom_call.1} parent=11 // pred_check
          %p211 = pneg %p65
        $region14: #{tpu_custom_call.1} parent=11 // pred_check_branch
          %213 = sbr.rel (%p211) target = $region16
        $region15: #{tpu_custom_call.1} parent=11 // pred_region
          _
        $region16: #{tpu_custom_call.1} parent=11 // pred_fallthru
          _
        // Predicated region
        $region17: #{tpu_custom_call.1} parent=11 // pred_check
          %p214 = pneg %p86
        $region18: #{tpu_custom_call.1} parent=11 // pred_check_branch
          %216 = sbr.rel (%p214) target = $region20
        $region19: #{tpu_custom_call.1} parent=11 // pred_region
          _
        $region20: #{tpu_custom_call.1} parent=11 // pred_fallthru
          _
        // Predicated region
        $region21: #{tpu_custom_call.1} parent=11 // pred_check
          %p217 = pneg %p107
        $region22: #{tpu_custom_call.1} parent=11 // pred_check_branch
          %219 = sbr.rel (%p217) target = $region24
        $region23: #{tpu_custom_call.1} parent=11 // pred_region
          _
        $region24: #{tpu_custom_call.1} parent=11 // pred_fallthru
          _
        // Predicated region
        $region25: #{tpu_custom_call.1} parent=11 // pred_check
          %p220 = pneg %p128
        $region26: #{tpu_custom_call.1} parent=11 // pred_check_branch
          %222 = sbr.rel (%p220) target = $region28
        $region27: #{tpu_custom_call.1} parent=11 // pred_region
          _
        $region28: #{tpu_custom_call.1} parent=11 // pred_fallthru
          _
        // Predicated region
        $region29: #{tpu_custom_call.1} parent=11 // pred_check
          %p223 = pneg %p149
        $region30: #{tpu_custom_call.1} parent=11 // pred_check_branch
          %225 = sbr.rel (%p223) target = $region32
        $region31: #{tpu_custom_call.1} parent=11 // pred_region
          _
        $region32: #{tpu_custom_call.1} parent=11 // pred_fallthru
          _
        // Predicated region
        $region33: #{tpu_custom_call.1} parent=11 // pred_check
          %p226 = pneg %p170
        $region34: #{tpu_custom_call.1} parent=11 // pred_check_branch
          %228 = sbr.rel (%p226) target = $region36
        $region35: #{tpu_custom_call.1} parent=11 // pred_region
          _
        $region36: #{tpu_custom_call.1} parent=11 // pred_fallthru
          _
      $region12: #{tpu_custom_call.1} parent=5 // pred_fallthru
        _
      %p229 = scmp.lt.s32.totalorder %s18, 2
      // Predicated region
      $region37: #{tpu_custom_call.1} parent=5 // pred_check
        %p230 = pneg %p229
      $region38: #{tpu_custom_call.1} parent=5 // pred_check_branch
        %232 = sbr.rel (%p230) target = $region40
      $region39: #{tpu_custom_call.1} parent=5 // pred_region
        // Predicated region
        $region41: #{tpu_custom_call.1} parent=39 // pred_check
          %p233 = pneg %p38
        $region42: #{tpu_custom_call.1} parent=39 // pred_check_branch
          %235 = sbr.rel (%p233) target = $region44
        $region43: #{tpu_custom_call.1} parent=39 // pred_region
          %s236 = sand.u32 %s28, 1
          %s237 = sand.u32 %s28, 1
          %s238 = smul.addr %s237, 32
          %s239 = scalar_lea.vmem [#allocation3], %s238
          %s240 = smul.u32 4, %s18
          %s241 = smul.addr %s240, 4
          %s242 = scalar_lea.vmem %s0, %s241
          // Predicated region
          $region45: #{tpu_custom_call.1} parent=43 // pred_check
            _
          $region46: #{tpu_custom_call.1} parent=43 // pred_check_branch
            %244 = sbr.rel (0) target = $region48
          $region47: #{tpu_custom_call.1} parent=43 // pred_region
            // Predicated region
            $region49: #{tpu_custom_call.1} parent=47 // pred_check
              _
            $region50: #{tpu_custom_call.1} parent=47 // pred_check_branch
              %246 = sbr.rel (0) target = $region52
            $region51: #{tpu_custom_call.1} parent=47 // pred_region
              loop: start=0, step=1, limit=1
              $region53: #{tpu_custom_call.1} parent=51 // loop_pre_header
                _
              $region54: #{tpu_custom_call.1} parent=51 // loop_header
                %s248 = sphi 0, %s252
                %p249 = scmp.ge.s32.totalorder %s248, 1
                %s253 = sphi %s242, %s242
                %s254 = sphi %s239, %s239
              $region55: #{tpu_custom_call.1} parent=51 // loop_header_branch
                %251 = sbr.rel (%p249) target = $region59
              $region56: #{tpu_custom_call.1} parent=51 // loop_body
                %v255 = vld [vmem:[%s253] sm:$0xff]
                %256 = vst [vmem:[%s254] sm:$0xff] %v255
                %v257 = vld [vmem:[%s253 + $0x8] sm:$0xff]
                %258 = vst [vmem:[%s254 + $0x8] sm:$0xff] %v257
                %v259 = vld [vmem:[%s253 + $0x20] sm:$0xff]
                %260 = vst [vmem:[%s254 + $0x10] sm:$0xff] %v259
                %v261 = vld [vmem:[%s253 + $0x28] sm:$0xff]
                %262 = vst [vmem:[%s254 + $0x18] sm:$0xff] %v261
              $region57: #{tpu_custom_call.1} parent=51 // loop_footer
                %s252 = sadd.s32 1, %s248
              $region58: #{tpu_custom_call.1} parent=51 // loop_footer_branch
                %247 = sbr.rel target = $region54
              $region59: #{tpu_custom_call.1} parent=51 // loop_exit
                _
            $region52: #{tpu_custom_call.1} parent=47 // pred_fallthru
              _
            // Predicated region
            $region60: #{tpu_custom_call.1} parent=47 // pred_check
              _
            $region61: #{tpu_custom_call.1} parent=47 // pred_check_branch
              %264 = sbr.rel target = $region63
            $region62: #{tpu_custom_call.1} parent=47 // pred_region
              _
            $region63: #{tpu_custom_call.1} parent=47 // pred_fallthru
              _
          $region48: #{tpu_custom_call.1} parent=43 // pred_fallthru
            _
          %265 = vnop
        $region44: #{tpu_custom_call.1} parent=39 // pred_fallthru
          _
      $region40: #{tpu_custom_call.1} parent=5 // pred_fallthru
        _
      %p266 = scmp.le.s32.totalorder 1, %s18
      %p267 = scmp.lt.s32.totalorder %s18, 3
      %p268 = pnand %p266, %p267
      %p269 = pneg %p268
      // Predicated region
      $region64: #{tpu_custom_call.1} parent=5 // pred_check
        _
      $region65: #{tpu_custom_call.1} parent=5 // pred_check_branch
        %271 = sbr.rel (%p268) target = $region67
      $region66: #{tpu_custom_call.1} parent=5 // pred_region
        %s272 = ssub.s32 %s18, 1
        %s273 = sand.u32 %s31, 1
        %s274 = sand.u32 %s31, 1
        %s275 = smul.addr %s274, 32
        %s276 = scalar_lea.vmem [#allocation3], %s275
        // Predicated region
        $region68: #{tpu_custom_call.1} parent=66 // pred_check
          %p277 = pneg %p44
        $region69: #{tpu_custom_call.1} parent=66 // pred_check_branch
          %279 = sbr.rel (%p277) target = $region71
        $region70: #{tpu_custom_call.1} parent=66 // pred_region
          _
        $region71: #{tpu_custom_call.1} parent=66 // pred_fallthru
          _
        %s280 = sand.u32 %s31, 1
        %s281 = sand.u32 %s31, 1
        %s282 = smul.addr %s281, 32
        %s283 = scalar_lea.vmem [#allocation3], %s282
        %p284 = pneg %p44
        %p285 = pneg %p41
        %p286 = pneg %p65
        %p287 = pneg %p62
        %p288 = pneg %p86
        %p289 = pneg %p83
        %p290 = pneg %p107
        %p291 = pneg %p104
        %p292 = pneg %p128
        %p293 = pneg %p125
        %p294 = pneg %p149
        %p295 = pneg %p146
        %p296 = pneg %p170
        %p297 = pneg %p167
        %p298 = pneg %p196
        %p299 = pneg %p193
        %s300 = sand.u32 %s183, 1
        %s301 = scalar_lea.sflag [#allocation5], %s300
        %s302 = sand.u32 %s183, 1
        %s303 = smul.addr %s302, 4
        %s304 = scalar_lea.vmem [#allocation4], %s303
        %s305 = smul.u32 4, %s23
        %s306 = smul.u32 4, %s23
        %v308 = vld [vmem:[%s1] sm:$0xf]
        %v309 = vld [vmem:[%s1 + $0x4] sm:$0xf]
        %v310 = vld [vmem:[%s1 + $0x8] sm:$0xf]
        %v311 = vld [vmem:[%s1 + $0xc] sm:$0xf]
        %v312 = vld [vmem:[%s1 + $0x10] sm:$0xf]
        %v313 = vld [vmem:[%s1 + $0x14] sm:$0xf]
        %v314 = vld [vmem:[%s1 + $0x18] sm:$0xf]
        %v315 = vld [vmem:[%s1 + $0x1c] sm:$0xf]
        %v316 = vld [vmem:[%s1 + $0x20] sm:$0xf]
        %v317 = vld [vmem:[%s1 + $0x24] sm:$0xf]
        %v318 = vld [vmem:[%s1 + $0x28] sm:$0xf]
        %v319 = vld [vmem:[%s1 + $0x2c] sm:$0xf]
        %v320 = vld [vmem:[%s1 + $0x30] sm:$0xf]
        %v321 = vld [vmem:[%s1 + $0x34] sm:$0xf]
        %v322 = vld [vmem:[%s1 + $0x38] sm:$0xf]
        %v323 = vld [vmem:[%s1 + $0x3c] sm:$0xf]
        %v324 = vld [vmem:[%s276] sm:$0xff]
        %v325 = vld [vmem:[%s276 + $0x8] sm:$0xff]
        %v326 = vld [vmem:[%s276 + $0x10] sm:$0xff]
        %v327 = vld [vmem:[%s276 + $0x18] sm:$0xff]
        %v328 = vld [vmem:[%s2] sm:$0xff]
        %v329 = vld [vmem:[%s2 + $0x8] sm:$0xff]
        %v330 = vld [vmem:[%s2 + $0x10] sm:$0xff]
        %v331 = vld [vmem:[%s2 + $0x18] sm:$0xff]
        %v332 = vld [vmem:[%s2 + $0x20] sm:$0xff]
        %v333 = vld [vmem:[%s2 + $0x28] sm:$0xff]
        %v334 = vld [vmem:[%s2 + $0x30] sm:$0xff]
        %v335 = vld [vmem:[%s2 + $0x38] sm:$0xff]
        %v336 = vld [vmem:[%s2 + $0x40] sm:$0xff]
        %v337 = vld [vmem:[%s2 + $0x48] sm:$0xff]
        %v338 = vld [vmem:[%s2 + $0x50] sm:$0xff]
        %v339 = vld [vmem:[%s2 + $0x58] sm:$0xff]
        %v340 = vld [vmem:[%s2 + $0x60] sm:$0xff]
        %v341 = vld [vmem:[%s2 + $0x68] sm:$0xff]
        %v342 = vld [vmem:[%s2 + $0x70] sm:$0xff]
        %v343 = vld [vmem:[%s2 + $0x78] sm:$0xff]
        %345 = vset.pattern.permute.xlu0 0
        %346 = vperm.xlu0 %345, %v328
        %v347 = vpop.permute.xlu0 %346
        %350 = vset.pattern.permute.xlu0 0
        %351 = vperm.xlu0 %350, %v329
        %v352 = vpop.permute.xlu0 %351
        %355 = vset.pattern.permute.xlu0 0
        %356 = vperm.xlu0 %355, %v330
        %v357 = vpop.permute.xlu0 %356
        %360 = vset.pattern.permute.xlu0 0
        %361 = vperm.xlu0 %360, %v331
        %v362 = vpop.permute.xlu0 %361
        %365 = vset.pattern.permute.xlu0 0
        %366 = vperm.xlu0 %365, %v332
        %v367 = vpop.permute.xlu0 %366
        %370 = vset.pattern.permute.xlu0 0
        %371 = vperm.xlu0 %370, %v333
        %v372 = vpop.permute.xlu0 %371
        %375 = vset.pattern.permute.xlu0 0
        %376 = vperm.xlu0 %375, %v334
        %v377 = vpop.permute.xlu0 %376
        %380 = vset.pattern.permute.xlu0 0
        %381 = vperm.xlu0 %380, %v335
        %v382 = vpop.permute.xlu0 %381
        %385 = vset.pattern.permute.xlu0 0
        %386 = vperm.xlu0 %385, %v336
        %v387 = vpop.permute.xlu0 %386
        %390 = vset.pattern.permute.xlu0 0
        %391 = vperm.xlu0 %390, %v337
        %v392 = vpop.permute.xlu0 %391
        %395 = vset.pattern.permute.xlu0 0
        %396 = vperm.xlu0 %395, %v338
        %v397 = vpop.permute.xlu0 %396
        %400 = vset.pattern.permute.xlu0 0
        %401 = vperm.xlu0 %400, %v339
        %v402 = vpop.permute.xlu0 %401
        %405 = vset.pattern.permute.xlu0 0
        %406 = vperm.xlu0 %405, %v340
        %v407 = vpop.permute.xlu0 %406
        %410 = vset.pattern.permute.xlu0 0
        %411 = vperm.xlu0 %410, %v341
        %v412 = vpop.permute.xlu0 %411
        %415 = vset.pattern.permute.xlu0 0
        %416 = vperm.xlu0 %415, %v342
        %v417 = vpop.permute.xlu0 %416
        %420 = vset.pattern.permute.xlu0 0
        %421 = vperm.xlu0 %420, %v343
        %v422 = vpop.permute.xlu0 %421
        %v440 = vunpack.c.l.b16 %v308
        %v441 = vunpack.c.l.b16 %v309
        %v442 = vunpack.c.l.b16 %v310
        %v443 = vunpack.c.l.b16 %v311
        %v444 = vunpack.c.l.b16 %v312
        %v445 = vunpack.c.l.b16 %v313
        %v446 = vunpack.c.l.b16 %v314
        %v447 = vunpack.c.l.b16 %v315
        %v448 = vunpack.c.l.b16 %v316
        %v449 = vunpack.c.l.b16 %v317
        %v450 = vunpack.c.l.b16 %v318
        %v451 = vunpack.c.l.b16 %v319
        %v452 = vunpack.c.l.b16 %v320
        %v453 = vunpack.c.l.b16 %v321
        %v454 = vunpack.c.l.b16 %v322
        %v455 = vunpack.c.l.b16 %v323
        %v456 = vpack.c.b16 %v441, %v440
        %v457 = vpack.c.b16 %v443, %v442
        %v458 = vpack.c.b16 %v445, %v444
        %v459 = vpack.c.b16 %v447, %v446
        %v460 = vpack.c.b16 %v449, %v448
        %v461 = vpack.c.b16 %v451, %v450
        %v462 = vpack.c.b16 %v453, %v452
        %v463 = vpack.c.b16 %v455, %v454
        %v468 = vunpack.c.l.b16 %v324
        %v469 = vunpack.c.h.b16 %v324
        %v470 = vunpack.c.l.b16 %v325
        %v471 = vunpack.c.h.b16 %v325
        %v472 = vunpack.c.l.b16 %v326
        %v473 = vunpack.c.h.b16 %v326
        %v474 = vunpack.c.l.b16 %v327
        %v475 = vunpack.c.h.b16 %v327
        %v476 = vpack.c.b16 %v472, %v468
        %v477 = vpack.c.b16 %v473, %v469
        %v478 = vpack.c.b16 %v474, %v470
        %v479 = vpack.c.b16 %v475, %v471
        %vm484 = vcmask 130048
        %v486 = vsel %vm484, %v456, 0
        %v489 = vsel %vm484, %v457, 0
        %v492 = vsel %vm484, %v458, 0
        %v495 = vsel %vm484, %v459, 0
        %v498 = vsel %vm484, %v460, 0
        %v501 = vsel %vm484, %v461, 0
        %v504 = vsel %vm484, %v462, 0
        %v507 = vsel %vm484, %v463, 0
        %509 = vmatprep.subr.bf16.mxu0 %v477
        %510 = vmatpush1.bf16.msra.mxu0 %v476
        %511 = vmatprep.subr.bf16.mxu0 0
        %512 = vmatpush1.bf16.msra.mxu0 0
        %513 = vmatprep.subr.bf16.mxu0 0
        %514 = vmatpush1.bf16.msra.mxu0 0
        %515 = vmatprep.subr.bf16.mxu0 0
        %516 = vmatpush1.bf16.msra.mxu0 0
        %517 = vmatprep.subr.bf16.mxu0 0
        %518 = vmatpush1.bf16.msra.mxu0 0
        %519 = vmatprep.subr.bf16.mxu0 0
        %520 = vmatpush1.bf16.msra.mxu0 0
        %521 = vmatprep.subr.bf16.mxu0 0
        %522 = vmatpush1.bf16.msra.mxu0 0
        %523 = vmatprep.subr.bf16.mxu0 0
        %524 = vmatpush1.bf16.msra.mxu0 0
        %525 = vmatprep.subr.bf16.mxu0 0
        %526 = vmatpush1.bf16.msra.mxu0 0
        %527 = vmatprep.subr.bf16.mxu0 0
        %528 = vmatpush1.bf16.msra.mxu0 0
        %529 = vmatprep.subr.bf16.mxu0 0
        %530 = vmatpush1.bf16.msra.mxu0 0
        %531 = vmatprep.subr.bf16.mxu0 0
        %532 = vmatpush1.bf16.msra.mxu0 0
        %533 = vmatprep.subr.bf16.mxu0 0
        %534 = vmatpush1.bf16.msra.mxu0 0
        %535 = vmatprep.subr.bf16.mxu0 0
        %536 = vmatpush1.bf16.msra.mxu0 0
        %537 = vmatprep.subr.bf16.mxu0 0
        %538 = vmatpush1.bf16.msra.mxu0 0
        %539 = vmatprep.subr.bf16.mxu0 0
        %540 = vmatpush1.bf16.msra.mxu0 0
        %541 = vmatprep.mubr.bf16.mxu0 0
        %542 = vmatmul.mubr.bf16.gmra.mrb[0].mxu0 %v486
        %v543 = vpop.f32.mrb[0].mxu0
        %v544 = vadd.f32 %v347, %v543
        %v545 = vpop.f32.mrb[0].mxu0
        %v546 = vadd.f32 %v347, %v545
        %v547 = vpop.f32.mrb[0].mxu0
        %v548 = vadd.f32 %v352, %v547
        %v549 = vpop.f32.mrb[0].mxu0
        %v550 = vadd.f32 %v352, %v549
        %551 = vmatprep.mubr.bf16.mxu0 0
        %552 = vmatmul.mubr.bf16.gmra.mrb[0].mxu0 %v489
        %v553 = vpop.f32.mrb[0].mxu0
        %v554 = vadd.f32 %v357, %v553
        %v555 = vpop.f32.mrb[0].mxu0
        %v556 = vadd.f32 %v357, %v555
        %v557 = vpop.f32.mrb[0].mxu0
        %v558 = vadd.f32 %v362, %v557
        %v559 = vpop.f32.mrb[0].mxu0
        %v560 = vadd.f32 %v362, %v559
        %561 = vmatprep.mubr.bf16.mxu0 0
        %562 = vmatmul.mubr.bf16.gmra.mrb[0].mxu0 %v492
        %v563 = vpop.f32.mrb[0].mxu0
        %v564 = vadd.f32 %v367, %v563
        %v565 = vpop.f32.mrb[0].mxu0
        %v566 = vadd.f32 %v367, %v565
        %v567 = vpop.f32.mrb[0].mxu0
        %v568 = vadd.f32 %v372, %v567
        %v569 = vpop.f32.mrb[0].mxu0
        %v570 = vadd.f32 %v372, %v569
        %571 = vmatprep.mubr.bf16.mxu0 0
        %572 = vmatmul.mubr.bf16.gmra.mrb[0].mxu0 %v495
        %v573 = vpop.f32.mrb[0].mxu0
        %v574 = vadd.f32 %v377, %v573
        %v575 = vpop.f32.mrb[0].mxu0
        %v576 = vadd.f32 %v377, %v575
        %v577 = vpop.f32.mrb[0].mxu0
        %v578 = vadd.f32 %v382, %v577
        %v579 = vpop.f32.mrb[0].mxu0
        %v580 = vadd.f32 %v382, %v579
        %581 = vmatprep.mubr.bf16.mxu0 0
        %582 = vmatmul.mubr.bf16.gmra.mrb[0].mxu0 %v498
        %v583 = vpop.f32.mrb[0].mxu0
        %v584 = vadd.f32 %v387, %v583
        %v585 = vpop.f32.mrb[0].mxu0
        %v586 = vadd.f32 %v387, %v585
        %v587 = vpop.f32.mrb[0].mxu0
        %v588 = vadd.f32 %v392, %v587
        %v589 = vpop.f32.mrb[0].mxu0
        %v590 = vadd.f32 %v392, %v589
        %591 = vmatprep.mubr.bf16.mxu0 0
        %592 = vmatmul.mubr.bf16.gmra.mrb[0].mxu0 %v501
        %v593 = vpop.f32.mrb[0].mxu0
        %v594 = vadd.f32 %v397, %v593
        %v595 = vpop.f32.mrb[0].mxu0
        %v596 = vadd.f32 %v397, %v595
        %v597 = vpop.f32.mrb[0].mxu0
        %v598 = vadd.f32 %v402, %v597
        %v599 = vpop.f32.mrb[0].mxu0
        %v600 = vadd.f32 %v402, %v599
        %601 = vmatprep.mubr.bf16.mxu0 0
        %602 = vmatmul.mubr.bf16.gmra.mrb[0].mxu0 %v504
        %v603 = vpop.f32.mrb[0].mxu0
        %v604 = vadd.f32 %v407, %v603
        %v605 = vpop.f32.mrb[0].mxu0
        %v606 = vadd.f32 %v407, %v605
        %v607 = vpop.f32.mrb[0].mxu0
        %v608 = vadd.f32 %v412, %v607
        %v609 = vpop.f32.mrb[0].mxu0
        %v610 = vadd.f32 %v412, %v609
        %611 = vmatprep.mubr.bf16.mxu0 0
        %612 = vmatmul.mubr.bf16.gmra.mrb[0].mxu0 %v507
        %v613 = vpop.f32.mrb[0].mxu0
        %v614 = vadd.f32 %v417, %v613
        %v615 = vpop.f32.mrb[0].mxu0
        %v616 = vadd.f32 %v417, %v615
        %v617 = vpop.f32.mrb[0].mxu0
        %v618 = vadd.f32 %v422, %v617
        %v619 = vpop.f32.mrb[0].mxu0
        %v620 = vadd.f32 %v422, %v619
        %621 = vdwg.mxu0
        %622 = vmatprep.subr.bf16.mxu0 %v479
        %623 = vmatpush1.bf16.msra.mxu0 %v478
        %624 = vmatprep.subr.bf16.mxu0 0
        %625 = vmatpush1.bf16.msra.mxu0 0
        %626 = vmatprep.subr.bf16.mxu0 0
        %627 = vmatpush1.bf16.msra.mxu0 0
        %628 = vmatprep.subr.bf16.mxu0 0
        %629 = vmatpush1.bf16.msra.mxu0 0
        %630 = vmatprep.subr.bf16.mxu0 0
        %631 = vmatpush1.bf16.msra.mxu0 0
        %632 = vmatprep.subr.bf16.mxu0 0
        %633 = vmatpush1.bf16.msra.mxu0 0
        %634 = vmatprep.subr.bf16.mxu0 0
        %635 = vmatpush1.bf16.msra.mxu0 0
        %636 = vmatprep.subr.bf16.mxu0 0
        %637 = vmatpush1.bf16.msra.mxu0 0
        %638 = vmatprep.subr.bf16.mxu0 0
        %639 = vmatpush1.bf16.msra.mxu0 0
        %640 = vmatprep.subr.bf16.mxu0 0
        %641 = vmatpush1.bf16.msra.mxu0 0
        %642 = vmatprep.subr.bf16.mxu0 0
        %643 = vmatpush1.bf16.msra.mxu0 0
        %644 = vmatprep.subr.bf16.mxu0 0
        %645 = vmatpush1.bf16.msra.mxu0 0
        %646 = vmatprep.subr.bf16.mxu0 0
        %647 = vmatpush1.bf16.msra.mxu0 0
        %648 = vmatprep.subr.bf16.mxu0 0
        %649 = vmatpush1.bf16.msra.mxu0 0
        %650 = vmatprep.subr.bf16.mxu0 0
        %651 = vmatpush1.bf16.msra.mxu0 0
        %652 = vmatprep.subr.bf16.mxu0 0
        %653 = vmatpush1.bf16.msra.mxu0 0
        %654 = vmatprep.mubr.bf16.mxu0 0
        %655 = vmatmul.mubr.bf16.gmra.mrb[0].mxu0 %v486
        %v656 = vpop.f32.mrb[0].mxu0
        %v657 = vadd.f32 %v347, %v656
        %v658 = vpop.f32.mrb[0].mxu0
        %v659 = vadd.f32 %v347, %v658
        %v660 = vpop.f32.mrb[0].mxu0
        %v661 = vadd.f32 %v352, %v660
        %v662 = vpop.f32.mrb[0].mxu0
        %v663 = vadd.f32 %v352, %v662
        %664 = vmatprep.mubr.bf16.mxu0 0
        %665 = vmatmul.mubr.bf16.gmra.mrb[0].mxu0 %v489
        %v666 = vpop.f32.mrb[0].mxu0
        %v667 = vadd.f32 %v357, %v666
        %v668 = vpop.f32.mrb[0].mxu0
        %v669 = vadd.f32 %v357, %v668
        %v670 = vpop.f32.mrb[0].mxu0
        %v671 = vadd.f32 %v362, %v670
        %v672 = vpop.f32.mrb[0].mxu0
        %v673 = vadd.f32 %v362, %v672
        %674 = vmatprep.mubr.bf16.mxu0 0
        %675 = vmatmul.mubr.bf16.gmra.mrb[0].mxu0 %v492
        %v676 = vpop.f32.mrb[0].mxu0
        %v677 = vadd.f32 %v367, %v676
        %v678 = vpop.f32.mrb[0].mxu0
        %v679 = vadd.f32 %v367, %v678
        %v680 = vpop.f32.mrb[0].mxu0
        %v681 = vadd.f32 %v372, %v680
        %v682 = vpop.f32.mrb[0].mxu0
        %v683 = vadd.f32 %v372, %v682
        %684 = vmatprep.mubr.bf16.mxu0 0
        %685 = vmatmul.mubr.bf16.gmra.mrb[0].mxu0 %v495
        %v686 = vpop.f32.mrb[0].mxu0
        %v687 = vadd.f32 %v377, %v686
        %v688 = vpop.f32.mrb[0].mxu0
        %v689 = vadd.f32 %v377, %v688
        %v690 = vpop.f32.mrb[0].mxu0
        %v691 = vadd.f32 %v382, %v690
        %v692 = vpop.f32.mrb[0].mxu0
        %v693 = vadd.f32 %v382, %v692
        %694 = vmatprep.mubr.bf16.mxu0 0
        %695 = vmatmul.mubr.bf16.gmra.mrb[0].mxu0 %v498
        %v696 = vpop.f32.mrb[0].mxu0
        %v697 = vadd.f32 %v387, %v696
        %v698 = vpop.f32.mrb[0].mxu0
        %v699 = vadd.f32 %v387, %v698
        %v700 = vpop.f32.mrb[0].mxu0
        %v701 = vadd.f32 %v392, %v700
        %v702 = vpop.f32.mrb[0].mxu0
        %v703 = vadd.f32 %v392, %v702
        %704 = vmatprep.mubr.bf16.mxu0 0
        %705 = vmatmul.mubr.bf16.gmra.mrb[0].mxu0 %v501
        %v706 = vpop.f32.mrb[0].mxu0
        %v707 = vadd.f32 %v397, %v706
        %v708 = vpop.f32.mrb[0].mxu0
        %v709 = vadd.f32 %v397, %v708
        %v710 = vpop.f32.mrb[0].mxu0
        %v711 = vadd.f32 %v402, %v710
        %v712 = vpop.f32.mrb[0].mxu0
        %v713 = vadd.f32 %v402, %v712
        %714 = vmatprep.mubr.bf16.mxu0 0
        %715 = vmatmul.mubr.bf16.gmra.mrb[0].mxu0 %v504
        %v716 = vpop.f32.mrb[0].mxu0
        %v717 = vadd.f32 %v407, %v716
        %v718 = vpop.f32.mrb[0].mxu0
        %v719 = vadd.f32 %v407, %v718
        %v720 = vpop.f32.mrb[0].mxu0
        %v721 = vadd.f32 %v412, %v720
        %v722 = vpop.f32.mrb[0].mxu0
        %v723 = vadd.f32 %v412, %v722
        %724 = vmatprep.mubr.bf16.mxu0 0
        %725 = vmatmul.mubr.bf16.gmra.mrb[0].mxu0 %v507
        %v726 = vpop.f32.mrb[0].mxu0
        %v727 = vadd.f32 %v417, %v726
        %v728 = vpop.f32.mrb[0].mxu0
        %v729 = vadd.f32 %v417, %v728
        %v730 = vpop.f32.mrb[0].mxu0
        %v731 = vadd.f32 %v422, %v730
        %v732 = vpop.f32.mrb[0].mxu0
        %v733 = vadd.f32 %v422, %v732
        %734 = vdwg.mxu0
        %v735 = vmax.f32 %v544, 0.0
        %v736 = vmax.f32 %v546, 0.0
        %v737 = vmax.f32 %v657, 0.0
        %v738 = vmax.f32 %v659, 0.0
        %v739 = vmax.f32 %v548, 0.0
        %v740 = vmax.f32 %v550, 0.0
        %v741 = vmax.f32 %v661, 0.0
        %v742 = vmax.f32 %v663, 0.0
        %v743 = vmax.f32 %v554, 0.0
        %v744 = vmax.f32 %v556, 0.0
        %v745 = vmax.f32 %v667, 0.0
        %v746 = vmax.f32 %v669, 0.0
        %v747 = vmax.f32 %v558, 0.0
        %v748 = vmax.f32 %v560, 0.0
        %v749 = vmax.f32 %v671, 0.0
        %v750 = vmax.f32 %v673, 0.0
        %v751 = vmax.f32 %v564, 0.0
        %v752 = vmax.f32 %v566, 0.0
        %v753 = vmax.f32 %v677, 0.0
        %v754 = vmax.f32 %v679, 0.0
        %v755 = vmax.f32 %v568, 0.0
        %v756 = vmax.f32 %v570, 0.0
        %v757 = vmax.f32 %v681, 0.0
        %v758 = vmax.f32 %v683, 0.0
        %v759 = vmax.f32 %v574, 0.0
        %v760 = vmax.f32 %v576, 0.0
        %v761 = vmax.f32 %v687, 0.0
        %v762 = vmax.f32 %v689, 0.0
        %v763 = vmax.f32 %v578, 0.0
        %v764 = vmax.f32 %v580, 0.0
        %v765 = vmax.f32 %v691, 0.0
        %v766 = vmax.f32 %v693, 0.0
        %v767 = vmax.f32 %v584, 0.0
        %v768 = vmax.f32 %v586, 0.0
        %v769 = vmax.f32 %v697, 0.0
        %v770 = vmax.f32 %v699, 0.0
        %v771 = vmax.f32 %v588, 0.0
        %v772 = vmax.f32 %v590, 0.0
        %v773 = vmax.f32 %v701, 0.0
        %v774 = vmax.f32 %v703, 0.0
        %v775 = vmax.f32 %v594, 0.0
        %v776 = vmax.f32 %v596, 0.0
        %v777 = vmax.f32 %v707, 0.0
        %v778 = vmax.f32 %v709, 0.0
        %v779 = vmax.f32 %v598, 0.0
        %v780 = vmax.f32 %v600, 0.0
        %v781 = vmax.f32 %v711, 0.0
        %v782 = vmax.f32 %v713, 0.0
        %v783 = vmax.f32 %v604, 0.0
        %v784 = vmax.f32 %v606, 0.0
        %v785 = vmax.f32 %v717, 0.0
        %v786 = vmax.f32 %v719, 0.0
        %v787 = vmax.f32 %v608, 0.0
        %v788 = vmax.f32 %v610, 0.0
        %v789 = vmax.f32 %v721, 0.0
        %v790 = vmax.f32 %v723, 0.0
        %v791 = vmax.f32 %v614, 0.0
        %v792 = vmax.f32 %v616, 0.0
        %v793 = vmax.f32 %v727, 0.0
        %v794 = vmax.f32 %v729, 0.0
        %v795 = vmax.f32 %v618, 0.0
        %v796 = vmax.f32 %v620, 0.0
        %v797 = vmax.f32 %v731, 0.0
        %v798 = vmax.f32 %v733, 0.0
        %v799 = vld [vmem:[%s3] sm:$0xf]
        %v800 = vld [vmem:[%s3 + $0x4] sm:$0xf]
        %v801 = vld [vmem:[%s3 + $0x8] sm:$0xf]
        %v802 = vld [vmem:[%s3 + $0xc] sm:$0xf]
        %v803 = vld [vmem:[%s3 + $0x10] sm:$0xf]
        %v804 = vld [vmem:[%s3 + $0x14] sm:$0xf]
        %v805 = vld [vmem:[%s3 + $0x18] sm:$0xf]
        %v806 = vld [vmem:[%s3 + $0x1c] sm:$0xf]
        %v807 = vpack.c.bf16 %v739, %v735
        %v808 = vpack.c.bf16 %v740, %v736
        %v809 = vpack.c.bf16 %v741, %v737
        %v810 = vpack.c.bf16 %v742, %v738
        %v811 = vpack.c.bf16 %v747, %v743
        %v812 = vpack.c.bf16 %v748, %v744
        %v813 = vpack.c.bf16 %v749, %v745
        %v814 = vpack.c.bf16 %v750, %v746
        %v815 = vpack.c.bf16 %v755, %v751
        %v816 = vpack.c.bf16 %v756, %v752
        %v817 = vpack.c.bf16 %v757, %v753
        %v818 = vpack.c.bf16 %v758, %v754
        %v819 = vpack.c.bf16 %v763, %v759
        %v820 = vpack.c.bf16 %v764, %v760
        %v821 = vpack.c.bf16 %v765, %v761
        %v822 = vpack.c.bf16 %v766, %v762
        %v823 = vpack.c.bf16 %v771, %v767
        %v824 = vpack.c.bf16 %v772, %v768
        %v825 = vpack.c.bf16 %v773, %v769
        %v826 = vpack.c.bf16 %v774, %v770
        %v827 = vpack.c.bf16 %v779, %v775
        %v828 = vpack.c.bf16 %v780, %v776
        %v829 = vpack.c.bf16 %v781, %v777
        %v830 = vpack.c.bf16 %v782, %v778
        %v831 = vpack.c.bf16 %v787, %v783
        %v832 = vpack.c.bf16 %v788, %v784
        %v833 = vpack.c.bf16 %v789, %v785
        %v834 = vpack.c.bf16 %v790, %v786
        %v835 = vpack.c.bf16 %v795, %v791
        %v836 = vpack.c.bf16 %v796, %v792
        %v837 = vpack.c.bf16 %v797, %v793
        %v838 = vpack.c.bf16 %v798, %v794
        %v839 = vld [vmem:[%s4] sm:$0xff]
        %v840 = vld [vmem:[%s4 + $0x8] sm:$0xff]
        %v841 = vld [vmem:[%s4 + $0x10] sm:$0xff]
        %v842 = vld [vmem:[%s4 + $0x18] sm:$0xff]
        %v843 = vld [vmem:[%s4 + $0x20] sm:$0xff]
        %v844 = vld [vmem:[%s4 + $0x28] sm:$0xff]
        %v845 = vld [vmem:[%s4 + $0x30] sm:$0xff]
        %v846 = vld [vmem:[%s4 + $0x38] sm:$0xff]
        %848 = vset.pattern.permute.xlu0 0
        %849 = vperm.xlu0 %848, %v839
        %v850 = vpop.permute.xlu0 %849
        %853 = vset.pattern.permute.xlu0 0
        %854 = vperm.xlu0 %853, %v840
        %v855 = vpop.permute.xlu0 %854
        %858 = vset.pattern.permute.xlu0 0
        %859 = vperm.xlu0 %858, %v841
        %v860 = vpop.permute.xlu0 %859
        %863 = vset.pattern.permute.xlu0 0
        %864 = vperm.xlu0 %863, %v842
        %v865 = vpop.permute.xlu0 %864
        %868 = vset.pattern.permute.xlu0 0
        %869 = vperm.xlu0 %868, %v843
        %v870 = vpop.permute.xlu0 %869
        %873 = vset.pattern.permute.xlu0 0
        %874 = vperm.xlu0 %873, %v844
        %v875 = vpop.permute.xlu0 %874
        %878 = vset.pattern.permute.xlu0 0
        %879 = vperm.xlu0 %878, %v845
        %v880 = vpop.permute.xlu0 %879
        %883 = vset.pattern.permute.xlu0 0
        %884 = vperm.xlu0 %883, %v846
        %v885 = vpop.permute.xlu0 %884
        %v895 = vunpack.c.l.b16 %v799
        %v896 = vunpack.c.l.b16 %v800
        %v897 = vunpack.c.l.b16 %v801
        %v898 = vunpack.c.l.b16 %v802
        %v899 = vunpack.c.l.b16 %v803
        %v900 = vunpack.c.l.b16 %v804
        %v901 = vunpack.c.l.b16 %v805
        %v902 = vunpack.c.l.b16 %v806
        %v903 = vpack.c.b16 %v896, %v895
        %v904 = vpack.c.b16 %v898, %v897
        %v905 = vpack.c.b16 %v900, %v899
        %v906 = vpack.c.b16 %v902, %v901
        %911 = vmatprep.subr.bf16.mxu0 %v808
        %912 = vmatpush1.bf16.msra.mxu0 %v807
        %913 = vmatprep.subr.bf16.mxu0 %v812
        %914 = vmatpush1.bf16.msra.mxu0 %v811
        %915 = vmatprep.subr.bf16.mxu0 %v816
        %916 = vmatpush1.bf16.msra.mxu0 %v815
        %917 = vmatprep.subr.bf16.mxu0 %v820
        %918 = vmatpush1.bf16.msra.mxu0 %v819
        %919 = vmatprep.subr.bf16.mxu0 %v824
        %920 = vmatpush1.bf16.msra.mxu0 %v823
        %921 = vmatprep.subr.bf16.mxu0 %v828
        %922 = vmatpush1.bf16.msra.mxu0 %v827
        %923 = vmatprep.subr.bf16.mxu0 %v832
        %924 = vmatpush1.bf16.msra.mxu0 %v831
        %925 = vmatprep.subr.bf16.mxu0 %v836
        %926 = vmatpush1.bf16.msra.mxu0 %v835
        %927 = vmatprep.subr.bf16.mxu0 0
        %928 = vmatpush1.bf16.msra.mxu0 0
        %929 = vmatprep.subr.bf16.mxu0 0
        %930 = vmatpush1.bf16.msra.mxu0 0
        %931 = vmatprep.subr.bf16.mxu0 0
        %932 = vmatpush1.bf16.msra.mxu0 0
        %933 = vmatprep.subr.bf16.mxu0 0
        %934 = vmatpush1.bf16.msra.mxu0 0
        %935 = vmatprep.subr.bf16.mxu0 0
        %936 = vmatpush1.bf16.msra.mxu0 0
        %937 = vmatprep.subr.bf16.mxu0 0
        %938 = vmatpush1.bf16.msra.mxu0 0
        %939 = vmatprep.subr.bf16.mxu0 0
        %940 = vmatpush1.bf16.msra.mxu0 0
        %941 = vmatprep.subr.bf16.mxu0 0
        %942 = vmatpush1.bf16.msra.mxu0 0
        %943 = vmatprep.mubr.bf16.mxu0 0
        %944 = vmatmul.mubr.bf16.gmra.mrb[0].mxu0 %v903
        %v945 = vpop.f32.mrb[0].mxu0
        %v946 = vadd.f32 %v850, %v945
        %v947 = vpop.f32.mrb[0].mxu0
        %v948 = vadd.f32 %v850, %v947
        %v949 = vpop.f32.mrb[0].mxu0
        %v950 = vadd.f32 %v855, %v949
        %v951 = vpop.f32.mrb[0].mxu0
        %v952 = vadd.f32 %v855, %v951
        %953 = vmatprep.mubr.bf16.mxu0 0
        %954 = vmatmul.mubr.bf16.gmra.mrb[0].mxu0 %v904
        %v955 = vpop.f32.mrb[0].mxu0
        %v956 = vadd.f32 %v860, %v955
        %v957 = vpop.f32.mrb[0].mxu0
        %v958 = vadd.f32 %v860, %v957
        %v959 = vpop.f32.mrb[0].mxu0
        %v960 = vadd.f32 %v865, %v959
        %v961 = vpop.f32.mrb[0].mxu0
        %v962 = vadd.f32 %v865, %v961
        %963 = vmatprep.mubr.bf16.mxu0 0
        %964 = vmatmul.mubr.bf16.gmra.mrb[0].mxu0 %v905
        %v965 = vpop.f32.mrb[0].mxu0
        %v966 = vadd.f32 %v870, %v965
        %v967 = vpop.f32.mrb[0].mxu0
        %v968 = vadd.f32 %v870, %v967
        %v969 = vpop.f32.mrb[0].mxu0
        %v970 = vadd.f32 %v875, %v969
        %v971 = vpop.f32.mrb[0].mxu0
        %v972 = vadd.f32 %v875, %v971
        %973 = vmatprep.mubr.bf16.mxu0 0
        %974 = vmatmul.mubr.bf16.gmra.mrb[0].mxu0 %v906
        %v975 = vpop.f32.mrb[0].mxu0
        %v976 = vadd.f32 %v880, %v975
        %v977 = vpop.f32.mrb[0].mxu0
        %v978 = vadd.f32 %v880, %v977
        %v979 = vpop.f32.mrb[0].mxu0
        %v980 = vadd.f32 %v885, %v979
        %v981 = vpop.f32.mrb[0].mxu0
        %v982 = vadd.f32 %v885, %v981
        %983 = vdwg.mxu0
        %984 = vmatprep.subr.bf16.mxu0 %v810
        %985 = vmatpush1.bf16.msra.mxu0 %v809
        %986 = vmatprep.subr.bf16.mxu0 %v814
        %987 = vmatpush1.bf16.msra.mxu0 %v813
        %988 = vmatprep.subr.bf16.mxu0 %v818
        %989 = vmatpush1.bf16.msra.mxu0 %v817
        %990 = vmatprep.subr.bf16.mxu0 %v822
        %991 = vmatpush1.bf16.msra.mxu0 %v821
        %992 = vmatprep.subr.bf16.mxu0 %v826
        %993 = vmatpush1.bf16.msra.mxu0 %v825
        %994 = vmatprep.subr.bf16.mxu0 %v830
        %995 = vmatpush1.bf16.msra.mxu0 %v829
        %996 = vmatprep.subr.bf16.mxu0 %v834
        %997 = vmatpush1.bf16.msra.mxu0 %v833
        %998 = vmatprep.subr.bf16.mxu0 %v838
        %999 = vmatpush1.bf16.msra.mxu0 %v837
        %1000 = vmatprep.subr.bf16.mxu0 0
        %1001 = vmatpush1.bf16.msra.mxu0 0
        %1002 = vmatprep.subr.bf16.mxu0 0
        %1003 = vmatpush1.bf16.msra.mxu0 0
        %1004 = vmatprep.subr.bf16.mxu0 0
        %1005 = vmatpush1.bf16.msra.mxu0 0
        %1006 = vmatprep.subr.bf16.mxu0 0
        %1007 = vmatpush1.bf16.msra.mxu0 0
        %1008 = vmatprep.subr.bf16.mxu0 0
        %1009 = vmatpush1.bf16.msra.mxu0 0
        %1010 = vmatprep.subr.bf16.mxu0 0
        %1011 = vmatpush1.bf16.msra.mxu0 0
        %1012 = vmatprep.subr.bf16.mxu0 0
        %1013 = vmatpush1.bf16.msra.mxu0 0
        %1014 = vmatprep.subr.bf16.mxu0 0
        %1015 = vmatpush1.bf16.msra.mxu0 0
        %1016 = vmatprep.mubr.bf16.mxu0 0
        %1017 = vmatmul.mubr.bf16.gmra.mrb[0].mxu0 %v903
        %v1018 = vpop.f32.mrb[0].mxu0
        %v1019 = vadd.f32 %v850, %v1018
        %v1020 = vpop.f32.mrb[0].mxu0
        %v1021 = vadd.f32 %v850, %v1020
        %v1022 = vpop.f32.mrb[0].mxu0
        %v1023 = vadd.f32 %v855, %v1022
        %v1024 = vpop.f32.mrb[0].mxu0
        %v1025 = vadd.f32 %v855, %v1024
        %1026 = vmatprep.mubr.bf16.mxu0 0
        %1027 = vmatmul.mubr.bf16.gmra.mrb[0].mxu0 %v904
        %v1028 = vpop.f32.mrb[0].mxu0
        %v1029 = vadd.f32 %v860, %v1028
        %v1030 = vpop.f32.mrb[0].mxu0
        %v1031 = vadd.f32 %v860, %v1030
        %v1032 = vpop.f32.mrb[0].mxu0
        %v1033 = vadd.f32 %v865, %v1032
        %v1034 = vpop.f32.mrb[0].mxu0
        %v1035 = vadd.f32 %v865, %v1034
        %1036 = vmatprep.mubr.bf16.mxu0 0
        %1037 = vmatmul.mubr.bf16.gmra.mrb[0].mxu0 %v905
        %v1038 = vpop.f32.mrb[0].mxu0
        %v1039 = vadd.f32 %v870, %v1038
        %v1040 = vpop.f32.mrb[0].mxu0
        %v1041 = vadd.f32 %v870, %v1040
        %v1042 = vpop.f32.mrb[0].mxu0
        %v1043 = vadd.f32 %v875, %v1042
        %v1044 = vpop.f32.mrb[0].mxu0
        %v1045 = vadd.f32 %v875, %v1044
        %1046 = vmatprep.mubr.bf16.mxu0 0
        %1047 = vmatmul.mubr.bf16.gmra.mrb[0].mxu0 %v906
        %v1048 = vpop.f32.mrb[0].mxu0
        %v1049 = vadd.f32 %v880, %v1048
        %v1050 = vpop.f32.mrb[0].mxu0
        %v1051 = vadd.f32 %v880, %v1050
        %v1052 = vpop.f32.mrb[0].mxu0
        %v1053 = vadd.f32 %v885, %v1052
        %v1054 = vpop.f32.mrb[0].mxu0
        %v1055 = vadd.f32 %v885, %v1054
        %1056 = vdwg.mxu0
        %v1057 = vmax.f32 %v946, 0.0
        %v1058 = vmax.f32 %v948, 0.0
        %v1059 = vmax.f32 %v1019, 0.0
        %v1060 = vmax.f32 %v1021, 0.0
        %v1061 = vmax.f32 %v950, 0.0
        %v1062 = vmax.f32 %v952, 0.0
        %v1063 = vmax.f32 %v1023, 0.0
        %v1064 = vmax.f32 %v1025, 0.0
        %v1065 = vmax.f32 %v956, 0.0
        %v1066 = vmax.f32 %v958, 0.0
        %v1067 = vmax.f32 %v1029, 0.0
        %v1068 = vmax.f32 %v1031, 0.0
        %v1069 = vmax.f32 %v960, 0.0
        %v1070 = vmax.f32 %v962, 0.0
        %v1071 = vmax.f32 %v1033, 0.0
        %v1072 = vmax.f32 %v1035, 0.0
        %v1073 = vmax.f32 %v966, 0.0
        %v1074 = vmax.f32 %v968, 0.0
        %v1075 = vmax.f32 %v1039, 0.0
        %v1076 = vmax.f32 %v1041, 0.0
        %v1077 = vmax.f32 %v970, 0.0
        %v1078 = vmax.f32 %v972, 0.0
        %v1079 = vmax.f32 %v1043, 0.0
        %v1080 = vmax.f32 %v1045, 0.0
        %v1081 = vmax.f32 %v976, 0.0
        %v1082 = vmax.f32 %v978, 0.0
        %v1083 = vmax.f32 %v1049, 0.0
        %v1084 = vmax.f32 %v1051, 0.0
        %v1085 = vmax.f32 %v980, 0.0
        %v1086 = vmax.f32 %v982, 0.0
        %v1087 = vmax.f32 %v1053, 0.0
        %v1088 = vmax.f32 %v1055, 0.0
        %v1089 = vld [vmem:[%s5] sm:$0xff]
        %v1090 = vld [vmem:[%s5 + $0x8] sm:$0xff]
        %v1091 = vld [vmem:[%s5 + $0x10] sm:$0xff]
        %v1092 = vld [vmem:[%s5 + $0x18] sm:$0xff]
        %v1093 = vld [vmem:[%s5 + $0x20] sm:$0xff]
        %v1094 = vld [vmem:[%s5 + $0x28] sm:$0xff]
        %v1095 = vld [vmem:[%s5 + $0x30] sm:$0xff]
        %v1096 = vld [vmem:[%s5 + $0x38] sm:$0xff]
        %1098 = vset.pattern.permute.xlu0 0
        %1099 = vperm.xlu0 %1098, %v1089
        %v1100 = vpop.permute.xlu0 %1099
        %1103 = vset.pattern.permute.xlu0 0
        %1104 = vperm.xlu0 %1103, %v1090
        %v1105 = vpop.permute.xlu0 %1104
        %1108 = vset.pattern.permute.xlu0 0
        %1109 = vperm.xlu0 %1108, %v1091
        %v1110 = vpop.permute.xlu0 %1109
        %1113 = vset.pattern.permute.xlu0 0
        %1114 = vperm.xlu0 %1113, %v1092
        %v1115 = vpop.permute.xlu0 %1114
        %1118 = vset.pattern.permute.xlu0 0
        %1119 = vperm.xlu0 %1118, %v1093
        %v1120 = vpop.permute.xlu0 %1119
        %1123 = vset.pattern.permute.xlu0 0
        %1124 = vperm.xlu0 %1123, %v1094
        %v1125 = vpop.permute.xlu0 %1124
        %1128 = vset.pattern.permute.xlu0 0
        %1129 = vperm.xlu0 %1128, %v1095
        %v1130 = vpop.permute.xlu0 %1129
        %1133 = vset.pattern.permute.xlu0 0
        %1134 = vperm.xlu0 %1133, %v1096
        %v1135 = vpop.permute.xlu0 %1134
        %v1137 = vmul.f32 %v1057, %v1100
        %v1138 = vmul.f32 %v1058, %v1100
        %v1139 = vmul.f32 %v1059, %v1100
        %v1140 = vmul.f32 %v1060, %v1100
        %v1141 = vmul.f32 %v1061, %v1105
        %v1142 = vmul.f32 %v1062, %v1105
        %v1143 = vmul.f32 %v1063, %v1105
        %v1144 = vmul.f32 %v1064, %v1105
        %v1145 = vmul.f32 %v1065, %v1110
        %v1146 = vmul.f32 %v1066, %v1110
        %v1147 = vmul.f32 %v1067, %v1110
        %v1148 = vmul.f32 %v1068, %v1110
        %v1149 = vmul.f32 %v1069, %v1115
        %v1150 = vmul.f32 %v1070, %v1115
        %v1151 = vmul.f32 %v1071, %v1115
        %v1152 = vmul.f32 %v1072, %v1115
        %v1153 = vmul.f32 %v1073, %v1120
        %v1154 = vmul.f32 %v1074, %v1120
        %v1155 = vmul.f32 %v1075, %v1120
        %v1156 = vmul.f32 %v1076, %v1120
        %v1157 = vmul.f32 %v1077, %v1125
        %v1158 = vmul.f32 %v1078, %v1125
        %v1159 = vmul.f32 %v1079, %v1125
        %v1160 = vmul.f32 %v1080, %v1125
        %v1161 = vmul.f32 %v1081, %v1130
        %v1162 = vmul.f32 %v1082, %v1130
        %v1163 = vmul.f32 %v1083, %v1130
        %v1164 = vmul.f32 %v1084, %v1130
        %v1165 = vmul.f32 %v1085, %v1135
        %v1166 = vmul.f32 %v1086, %v1135
        %v1167 = vmul.f32 %v1087, %v1135
        %v1168 = vmul.f32 %v1088, %v1135
        %v1169 = vadd.f32 %v1137, %v1141
        %v1170 = vadd.f32 %v1169, %v1145
        %v1171 = vadd.f32 %v1170, %v1149
        %v1172 = vadd.f32 %v1171, %v1153
        %v1173 = vadd.f32 %v1172, %v1157
        %v1174 = vadd.f32 %v1173, %v1161
        %v1175 = vadd.f32 %v1174, %v1165
        %v1176 = vrot.slane %v1175, 4
        %v1177 = vadd.f32 %v1175, %v1176
        %v1178 = vrot.slane %v1177, 2
        %v1179 = vadd.f32 %v1177, %v1178
        %v1180 = vrot.slane %v1179, 1
        %v1181 = vadd.f32 %v1179, %v1180
        %v1182 = vadd.f32 %v1138, %v1142
        %v1183 = vadd.f32 %v1182, %v1146
        %v1184 = vadd.f32 %v1183, %v1150
        %v1185 = vadd.f32 %v1184, %v1154
        %v1186 = vadd.f32 %v1185, %v1158
        %v1187 = vadd.f32 %v1186, %v1162
        %v1188 = vadd.f32 %v1187, %v1166
        %v1189 = vrot.slane %v1188, 4
        %v1190 = vadd.f32 %v1188, %v1189
        %v1191 = vrot.slane %v1190, 2
        %v1192 = vadd.f32 %v1190, %v1191
        %v1193 = vrot.slane %v1192, 1
        %v1194 = vadd.f32 %v1192, %v1193
        %v1195 = vadd.f32 %v1139, %v1143
        %v1196 = vadd.f32 %v1195, %v1147
        %v1197 = vadd.f32 %v1196, %v1151
        %v1198 = vadd.f32 %v1197, %v1155
        %v1199 = vadd.f32 %v1198, %v1159
        %v1200 = vadd.f32 %v1199, %v1163
        %v1201 = vadd.f32 %v1200, %v1167
        %v1202 = vrot.slane %v1201, 4
        %v1203 = vadd.f32 %v1201, %v1202
        %v1204 = vrot.slane %v1203, 2
        %v1205 = vadd.f32 %v1203, %v1204
        %v1206 = vrot.slane %v1205, 1
        %v1207 = vadd.f32 %v1205, %v1206
        %v1208 = vadd.f32 %v1140, %v1144
        %v1209 = vadd.f32 %v1208, %v1148
        %v1210 = vadd.f32 %v1209, %v1152
        %v1211 = vadd.f32 %v1210, %v1156
        %v1212 = vadd.f32 %v1211, %v1160
        %v1213 = vadd.f32 %v1212, %v1164
        %v1214 = vadd.f32 %v1213, %v1168
        %v1215 = vrot.slane %v1214, 4
        %v1216 = vadd.f32 %v1214, %v1215
        %v1217 = vrot.slane %v1216, 2
        %v1218 = vadd.f32 %v1216, %v1217
        %v1219 = vrot.slane %v1218, 1
        %v1220 = vadd.f32 %v1218, %v1219
        %v1221 = vld [vmem:[#allocation2] sm:$0x1]
        %1223 = vset.pattern.permute.xlu0 0
        %1224 = vperm.xlu0 %1223, %v1221
        %v1225 = vpop.permute.xlu0 %1224
        %v1227 = vlaneseq
        %v1228 = vshrl.u32 %v1227, 7
        %v1229 = vsub.s32 0, %v1228
        %v1230 = vrot.slane %v1225, %v1229
        %v1231 = vadd.f32 %v1181, %v1230
        %v1232 = vadd.f32 %v1194, %v1230
        %v1233 = vadd.f32 %v1207, %v1230
        %v1234 = vadd.f32 %v1220, %v1230
        %v1239 = vcombine.low %v1231, %v1232
        %v1240 = vcombine.low %v1233, %v1234
        %v1242 = vunpack.c.l.s4 1966171168
        %v1243 = vunpack.c.0.s8 %v1242
        %v1244 = vlaneseq
        %v1245 = vshrl.u32 %v1244, 7
        %v1246 = vsub.s32 %v1243, %v1245
        %v1247 = vrot.slane %v1239, %v1246
        %v1249 = vunpack.c.l.s4 1966171168
        %v1250 = vunpack.c.0.s8 %v1249
        %v1251 = vlaneseq
        %v1252 = vshrl.u32 %v1251, 7
        %v1253 = vsub.s32 %v1250, %v1252
        %v1254 = vrot.slane %v1240, %v1253
        %v1255 = vcombine.low %v1247, %v1254
        %v1257 = vunpack.c.l.s4 1966171168
        %v1258 = vunpack.c.0.s8 %v1257
        %v1259 = vlaneseq
        %v1260 = vshrl.u32 %v1259, 7
        %v1261 = vsub.s32 %v1258, %v1260
        %v1262 = vrot.slane %v1255, %v1261
        %v1264 = vlaneseq
        %vm1265 = vcmp.ge.s32.totalorder %v1264, 0
        %vm1266 = vcmp.lt.s32.totalorder %v1264, 512
        %vm1267 = vmand %vm1265, %vm1266
        %1268 = vst.msk [vmem:[%s304] sm:$0xf] %vm1267, %v1262
        %s1269 = sand.u32 %s183, 1
        %s1270 = scalar_lea.sflag [#allocation5], %s1269
        %s1271 = sand.u32 %s183, 1
        %s1272 = smul.addr %s1271, 4
        %s1273 = scalar_lea.vmem [#allocation4], %s1272
        // Predicated region
        $region72: #{tpu_custom_call.1} parent=66 // pred_check
          %p1274 = pneg %p193
        $region73: #{tpu_custom_call.1} parent=66 // pred_check_branch
          %1276 = sbr.rel (%p1274) target = $region75
        $region74: #{tpu_custom_call.1} parent=66 // pred_region
          %s1277 = smul.u32 4, %s23
          %s1279 = ssub.s32 64, 64
          %1280 = vsyncadd %s1270, %s1279
          %s1281 = smul.addr %s1277, 16
          %s1282 = scalar_lea.hbm %s7, %s1281
          %s1284 = sshll.u32 %s1273, 4
          %s1285 = int_to_ptr.vmem [resolvable:$true] %s1284
          %1287 = dma.vmem_to_hbm [thread:$0]  %s1285, 64, %s1282, %s1270
        $region75: #{tpu_custom_call.1} parent=66 // pred_fallthru
          _
      $region67: #{tpu_custom_call.1} parent=5 // pred_fallthru
        _
      %p1288 = scmp.le.s32.totalorder 2, %s18
      // Predicated region
      $region76: #{tpu_custom_call.1} parent=5 // pred_check
        %p1289 = pneg %p1288
      $region77: #{tpu_custom_call.1} parent=5 // pred_check_branch
        %1291 = sbr.rel (%p1289) target = $region79
      $region78: #{tpu_custom_call.1} parent=5 // pred_region
        %s1292 = ssub.s32 %s18, 2
        // Predicated region
        $region80: #{tpu_custom_call.1} parent=78 // pred_check
          %p1293 = pneg %p199
        $region81: #{tpu_custom_call.1} parent=78 // pred_check_branch
          %1295 = sbr.rel (%p1293) target = $region83
        $region82: #{tpu_custom_call.1} parent=78 // pred_region
          %s1296 = sand.u32 %s184, 1
          %s1297 = scalar_lea.sflag [#allocation5], %s1296
          %s1298 = sand.u32 %s184, 1
          %s1299 = smul.addr %s1298, 4
          %s1300 = scalar_lea.vmem [#allocation4], %s1299
          %1301 = dma.done %s1297, 64
        $region83: #{tpu_custom_call.1} parent=78 // pred_fallthru
          _
      $region79: #{tpu_custom_call.1} parent=5 // pred_fallthru
        _
    $region6: #{tpu_custom_call.1} parent=1 // loop_footer
      %s22 = sadd.s32 1, %s18
    $region7: #{tpu_custom_call.1} parent=1 // loop_footer_branch
      %17 = sbr.rel target = $region3
    $region8: #{tpu_custom_call.1} parent=1 // loop_exit
      _
    %1302 = vsyncpa [#allocation5], 1
    %s1303 = scalar_lea.sflag [#allocation5], 1
    %1304 = vsyncpa %s1303, 1

</llo_original>
